<compile_context>
chip_gen: v5e
topology: v5e:2x2
jax: 0.10.0
libtpu: 0.0.40
codegen_flags: <defaults>
</compile_context>

<pallas_src>
import functools

import jax
import jax.numpy as jnp
from jax.experimental import pallas as pl
from jax.experimental.pallas import tpu as pltpu


def _round_up(x, m):
    return (x + m - 1) // m * m


def _pick_tile(dim, cap, align):
    """Largest tile <= cap (multiple of `align`) that minimizes padding of `dim`."""
    if dim <= cap:
        return dim
    best, best_pad = cap, _round_up(dim, cap) - dim
    for t in range(cap, align - 1, -align):
        pad = _round_up(dim, t) - dim
        if pad < best_pad:
            best, best_pad = t, pad
        if pad == 0:
            break
    return best


# --------------------------------------------------------------------------
# Kernels
# --------------------------------------------------------------------------
def _mm_kernel_single_k(x_ref, w_ref, o_ref):
    """Whole reduction in one grid step: write the output block directly."""
    o_ref[...] = jnp.dot(
        x_ref[...], w_ref[...], preferred_element_type=jnp.float32
    ).astype(o_ref.dtype)


def _mm_kernel_acc_out(x_ref, w_ref, o_ref):
    """K is tiled; accumulate into the resident f32 output block.

    Correct because K is the LAST grid axis (marked "arbitrary") and the output
    index_map ignores k, so the block stays in VMEM across the reduction.
    """
    @pl.when(pl.program_id(2) == 0)
    def _():
        o_ref[...] = jnp.zeros_like(o_ref)

    o_ref[...] += jnp.dot(
        x_ref[...], w_ref[...], preferred_element_type=jnp.float32
    )


def _mm_kernel_scratch(x_ref, w_ref, o_ref, acc_ref):
    """K tiled + narrow output dtype: f32 scratch accumulator, flush at k==last."""
    @pl.when(pl.program_id(2) == 0)
    def _():
        acc_ref[...] = jnp.zeros_like(acc_ref)

    acc_ref[...] += jnp.dot(
        x_ref[...], w_ref[...], preferred_element_type=jnp.float32
    )

    @pl.when(pl.program_id(2) == pl.num_programs(2) - 1)
    def _():
        o_ref[...] = acc_ref[...].astype(o_ref.dtype)


# --------------------------------------------------------------------------
# Wrapper
# --------------------------------------------------------------------------
@functools.partial(jax.jit, static_argnames=("tm", "tn", "tk", "compute_dtype"))
def w_contrastive_forward(x, W, *, tm=None, tn=None, tk=None, compute_dtype=None):
    """Computes x @ W (the W_contrastive forward) with a tiled Pallas matmul.

    x may have any number of leading batch dims; the last dim must match W's
    first dim.  `compute_dtype` optionally casts operands (e.g. jnp.bfloat16 on
    v6e/v7x for ~2x MXU rate and half the HBM traffic); accumulation stays f32
    and the output keeps x.dtype.
    """
    *lead, K = x.shape
    K2, N = W.shape
    assert K == K2, "inner dims must match"

    x2 = x.reshape(-1, K)
    M = x2.shape[0]

    out_dtype = x.dtype
    if compute_dtype is None:
        compute_dtype = x.dtype
    in_bytes = jnp.dtype(compute_dtype).itemsize
    out_bytes = jnp.dtype(out_dtype).itemsize
    # Minimum sublane tile for the packed operand dtype (8 f32, 16 bf16, 32 int8/fp8).
    sub = 8 * (4 // max(in_bytes, 1))

    # --- Tile selection ---------------------------------------------------
    # Full-extent blocks (== array dim) need no (8,128) alignment and no padding;
    # that is the common W_contrastive regime.  Large dims get big aligned tiles.
    if tm is None:
        tm = M if M <= 1024 else _pick_tile(M, 256, sub)
    if tn is None:
        tn = N if N <= 512 else _pick_tile(N, 512, 128)   # multiple of 128 -> lane-dense vst
    if tk is None:
        tk = K if K <= 1024 else _pick_tile(K, 1024, 128)  # big per-step W DMA

    Mp = M if tm == M else _round_up(M, tm)
    Np = N if tn == N else _round_up(N, tn)
    Kp = K if tk == K else _round_up(K, tk)

    xp = x2.astype(compute_dtype)
    Wp = W.astype(compute_dtype)
    if (Mp, Kp) != (M, K):
        xp = jnp.pad(xp, ((0, Mp - M), (0, Kp - K)))
    if (Kp, Np) != (K, N):
        Wp = jnp.pad(Wp, ((0, Kp - K), (0, Np - N)))

    grid = (Mp // tm, Np // tn, Kp // tk)
    gk = grid[2]

    if gk == 1:
        kernel, scratch = _mm_kernel_single_k, []
    elif jnp.dtype(out_dtype) == jnp.dtype(jnp.float32):
        kernel, scratch = _mm_kernel_acc_out, []
    else:
        kernel, scratch = _mm_kernel_scratch, [pltpu.VMEM((tm, tn), jnp.float32)]

    # --- VMEM budget (double-buffered inputs + output, + acc if present) ---
    needed = 2 * (tm * tk + tk * tn) * in_bytes + 2 * tm * tn * out_bytes
    if scratch:
        needed += tm * tn * 4
    # 2x headroom, at least 32 MiB, never above v7x's 64 MiB physical VMEM.
    vmem_limit = int(min(max(2 * needed, 32 << 20), 64 << 20))

    out = pl.pallas_call(
        kernel,
        out_shape=jax.ShapeDtypeStruct((Mp, Np), out_dtype),
        grid_spec=pltpu.PrefetchScalarGridSpec(
            num_scalar_prefetch=0,
            grid=grid,
            in_specs=[
                pl.BlockSpec((tm, tk), lambda i, j, k: (i, k)),
                pl.BlockSpec((tk, tn), lambda i, j, k: (k, j)),
            ],
            out_specs=pl.BlockSpec((tm, tn), lambda i, j, k: (i, j)),
            scratch_shapes=scratch,
        ),
        compiler_params=pltpu.CompilerParams(
            # K must remain the LAST grid axis (and "arbitrary") for the
            # accumulator init/flush pattern to be correct.
            dimension_semantics=("parallel", "parallel", "arbitrary"),
            vmem_limit_bytes=vmem_limit,
        ),
        cost_estimate=pl.CostEstimate(
            flops=2 * M * N * K,
            transcendentals=0,
            bytes_accessed=in_bytes * (M * K + K * N) + out_bytes * M * N,
        ),
    )(xp, Wp)

    if (Mp, Np) != (M, N):
        out = out[:M, :N]
    return out.reshape(*lead, N)


def init_w_contrastive_params(key, d, dtype=jnp.float32):
    """xavier_uniform init of W: U(-a, a), a = sqrt(6/(d+d))."""
    bound = jnp.sqrt(6.0 / (d + d)).astype(dtype)
    return jax.random.uniform(key, (d, d), dtype=dtype, minval=-bound, maxval=bound)


if __name__ == "__main__":
    key = jax.random.PRNGKey(0)
    k_x, k_w = jax.random.split(key)

    # 1) Small canonical case: single block, zero padding.
    batch, d = 8, 128
    x = jax.random.normal(k_x, (batch, d), dtype=jnp.float32)
    W = init_w_contrastive_params(k_w, d)
    out = w_contrastive_forward(x, W)
    jax.block_until_ready(out)
    assert out.shape == (batch, d)
    assert jnp.allclose(out, x @ W, atol=1e-5, rtol=1e-5)

    # 2) Force multi-tile grid (padding + accumulate-into-output path).
    batch2, d2 = 70, 384
    x2 = jax.random.normal(k_x, (batch2, d2), dtype=jnp.float32)
    W2 = init_w_contrastive_params(k_w, d2)
    out2 = w_contrastive_forward(x2, W2, tm=256, tn=256, tk=256)
    jax.block_until_ready(out2)
    assert out2.shape == (batch2, d2)
    assert jnp.allclose(out2, x2 @ W2, atol=1e-4, rtol=1e-4)

    # 3) Leading batch dims (x is 3-D, matching torch's `x @ W` broadcasting).
    x3 = jax.random.normal(k_x, (2, 9, 256), dtype=jnp.float32)
    W3 = init_w_contrastive_params(k_w, 256)
    out3 = w_contrastive_forward(x3, W3)
    jax.block_until_ready(out3)
    assert out3.shape == (2, 9, 256)
    assert jnp.allclose(out3, x3 @ W3, atol=1e-4, rtol=1e-4)

    # 4) bf16 output + tiled K -> scratch-accumulator path.
    x4 = jax.random.normal(k_x, (48, 384), dtype=jnp.bfloat16)
    W4 = init_w_contrastive_params(k_w, 384, dtype=jnp.bfloat16)
    out4 = w_contrastive_forward(x4, W4, tk=128)
    jax.block_until_ready(out4)
    ref4 = x4.astype(jnp.float32) @ W4.astype(jnp.float32)
    assert out4.shape == (48, 384) and out4.dtype == jnp.bfloat16
    assert jnp.allclose(out4.astype(jnp.float32), ref4, atol=0.1, rtol=0.05)

    print("KERNEL_OK")
</pallas_src>

<mosaic_0001>
module attributes {stable_mosaic.version = 11 : i64} {
  func.func @_mm_kernel_single_k(%arg0: i32, %arg1: i32, %arg2: i32, %arg3: memref<8x128xf32, #tpu.memory_space<vmem>>, %arg4: memref<128x128xf32, #tpu.memory_space<vmem>>, %arg5: memref<8x128xf32, #tpu.memory_space<vmem>>) attributes {dimension_semantics = [#tpu.dimension_semantics<parallel>, #tpu.dimension_semantics<parallel>, #tpu.dimension_semantics<arbitrary>], iteration_bounds = array<i64: 1, 1, 1>, scalar_prefetch = 0 : i64, scratch_operands = 0 : i64, tpu.core_type = #tpu.core_type<tc>, window_params = [{transform_indices = @transform_0, window_bounds = array<i64: 8, 128>}, {transform_indices = @transform_1, window_bounds = array<i64: 128, 128>}, {transform_indices = @transform_2, window_bounds = array<i64: 8, 128>}]} {
    %c0 = arith.constant 0 : index
    %c0_0 = arith.constant 0 : index
    %0 = vector.load %arg3[%c0, %c0_0] : memref<8x128xf32, #tpu.memory_space<vmem>>, vector<8x128xf32>
    %c0_1 = arith.constant 0 : index
    %c0_2 = arith.constant 0 : index
    %1 = vector.load %arg4[%c0_1, %c0_2] : memref<128x128xf32, #tpu.memory_space<vmem>>, vector<128x128xf32>
    %cst = arith.constant dense<0.000000e+00> : vector<8x128xf32>
    %2 = tpu.matmul %0, %1, %cst {dimension_numbers = #tpu.dot_dimension_numbers<[1], [0], [0], [1], [0, 0, 1, 1], [], []>} : vector<8x128xf32>, vector<128x128xf32>, vector<8x128xf32> -> vector<8x128xf32>
    %c0_3 = arith.constant 0 : index
    %c0_4 = arith.constant 0 : index
    %3 = vector.load %arg5[%c0_3, %c0_4] : memref<8x128xf32, #tpu.memory_space<vmem>>, vector<8x128xf32>
    tpu.vector_store %arg5[%c0_3, %c0_4], %2 {strides = array<i32>} : memref<8x128xf32, #tpu.memory_space<vmem>>, vector<8x128xf32>,
    return
  }
  func.func @transform_0(%arg0: i32, %arg1: i32, %arg2: i32) -> (i32, i32) {
    %c0_i32 = arith.constant 0 : i32
    return %arg0, %arg2 : i32, i32
  }
  func.func @transform_1(%arg0: i32, %arg1: i32, %arg2: i32) -> (i32, i32) {
    %c0_i32 = arith.constant 0 : i32
    return %arg2, %arg1 : i32, i32
  }
  func.func @transform_2(%arg0: i32, %arg1: i32, %arg2: i32) -> (i32, i32) {
    %c0_i32 = arith.constant 0 : i32
    return %arg0, %arg1 : i32, i32
  }
}

</mosaic_0001>

<llo_original>
// kernel: w_contrastive_forward.1
$region0: #{w_contrastive_forward.1}
  #allocation0 [shape = 'u32[]', space=smem, size = 0x4, offset = 0x4, fixed_abs, tag = 'smem constant byte address 0x4 - core index']
  #allocation1 [shape = 'u32[72,128]{1,0:T(1,128)}', space=vmem, size = 0x9000, scoped, tag = 'internal scratch']
  %s0 = inlined_call_operand.hbm [shape: f32[8,128], index: 0, kind: input, shape index: {}]
  %s1 = inlined_call_operand.hbm [shape: f32[128,128], index: 1, kind: input, shape index: {}]
  %s2 = inlined_call_operand.hbm [shape: f32[8,128], index: 2, kind: output, shape index: {}]
  %s3 = sld [smem:[#allocation0]]
  $region26: #{w_contrastive_forward.1} parent=0
    _
  %s5 = ssub.s32 1, %s3
  %s6 = scalar_select 0, %s5, %s3
  $region1: #{w_contrastive_forward.1} parent=0
    #allocation2 [shape = 'u8[4096]{0}', space=vmem, size = 0x1000, scoped, tag = 'input window, operand 0, single buffered']
    #allocation3 [shape = 's32[1]{0}', space=sflag, size = 0x4, scoped, tag = 'scoped memory for w_contrastive_forward.1']
    #allocation4 [shape = 's32[1]{0}', space=sflag, size = 0x4, scoped, tag = 'scoped memory for w_contrastive_forward.1']
    #allocation5 [shape = 'u8[65536]{0}', space=vmem, size = 0x10000, scoped, tag = 'input window, operand 1, single buffered']
    #allocation6 [shape = 's32[1]{0}', space=sflag, size = 0x4, scoped, tag = 'scoped memory for w_contrastive_forward.1']
    #allocation7 [shape = 'u8[4096]{0}', space=vmem, size = 0x1000, scoped, tag = 'output window, operand 0, single buffered']
    %7 = vsyncpa [#allocation3], 0
    %8 = vsyncpa [#allocation6], 0
    %9 = vsyncpa [#allocation4], 0
    // Predicated region
    $region2: #{w_contrastive_forward.1} parent=1 // pred_check
      _
    $region3: #{w_contrastive_forward.1} parent=1 // pred_check_branch
      %11 = sbr.rel (0) target = $region5
    $region4: #{w_contrastive_forward.1} parent=1 // pred_region
      %13 = vsyncadd [#allocation3], 0
      %s15 = sshll.u32 %s0, 4
      %s16 = int_to_ptr.hbm [resolvable:$true] %s15
      %s17 = sshll.u32 [#allocation2], 4
      %s18 = int_to_ptr.vmem [resolvable:$true] %s17
      %20 = dma.hbm_to_vmem [thread:$0]  %s16, 128, %s18, [#allocation3]
    $region5: #{w_contrastive_forward.1} parent=1 // pred_fallthru
      _
    // Predicated region
    $region6: #{w_contrastive_forward.1} parent=1 // pred_check
      _
    $region7: #{w_contrastive_forward.1} parent=1 // pred_check_branch
      %22 = sbr.rel (0) target = $region9
    $region8: #{w_contrastive_forward.1} parent=1 // pred_region
      %24 = vsyncadd [#allocation6], 0
      %s25 = sshll.u32 %s1, 4
      %s26 = int_to_ptr.hbm [resolvable:$true] %s25
      %s27 = sshll.u32 [#allocation5], 4
      %s28 = int_to_ptr.vmem [resolvable:$true] %s27
      %33 = dma.hbm_to_vmem [thread:$0]  %s26, 2048, %s28, [#allocation6], 128, 128, 8
    $region9: #{w_contrastive_forward.1} parent=1 // pred_fallthru
      _
    // Predicated region
    $region10: #{w_contrastive_forward.1} parent=1 // pred_check
      _
    $region11: #{w_contrastive_forward.1} parent=1 // pred_check_branch
      %35 = sbr.rel (0) target = $region13
    $region12: #{w_contrastive_forward.1} parent=1 // pred_region
      %37 = dma.done [#allocation3], 128
    $region13: #{w_contrastive_forward.1} parent=1 // pred_fallthru
      _
    // Predicated region
    $region14: #{w_contrastive_forward.1} parent=1 // pred_check
      _
    $region15: #{w_contrastive_forward.1} parent=1 // pred_check_branch
      %39 = sbr.rel (0) target = $region17
    $region16: #{w_contrastive_forward.1} parent=1 // pred_region
      %41 = dma.done [#allocation6], 2048
    $region17: #{w_contrastive_forward.1} parent=1 // pred_fallthru
      _
    %v42 = vld [vmem:[#allocation2] sm:$0xff]
    %v43 = vld [vmem:[#allocation5] sm:$0xff]
    %v44 = vld [vmem:[#allocation5 + $0x8] sm:$0xff]
    %v45 = vld [vmem:[#allocation5 + $0x10] sm:$0xff]
    %v46 = vld [vmem:[#allocation5 + $0x18] sm:$0xff]
    %v47 = vld [vmem:[#allocation5 + $0x20] sm:$0xff]
    %v48 = vld [vmem:[#allocation5 + $0x28] sm:$0xff]
    %v49 = vld [vmem:[#allocation5 + $0x30] sm:$0xff]
    %v50 = vld [vmem:[#allocation5 + $0x38] sm:$0xff]
    %v51 = vld [vmem:[#allocation5 + $0x40] sm:$0xff]
    %v52 = vld [vmem:[#allocation5 + $0x48] sm:$0xff]
    %v53 = vld [vmem:[#allocation5 + $0x50] sm:$0xff]
    %v54 = vld [vmem:[#allocation5 + $0x58] sm:$0xff]
    %v55 = vld [vmem:[#allocation5 + $0x60] sm:$0xff]
    %v56 = vld [vmem:[#allocation5 + $0x68] sm:$0xff]
    %v57 = vld [vmem:[#allocation5 + $0x70] sm:$0xff]
    %v58 = vld [vmem:[#allocation5 + $0x78] sm:$0xff]
    %59 = vmatpush.msra.mxu0 %v58
    %60 = vmatpush.msra.mxu0 %v57
    %61 = vmatpush.msra.mxu0 %v56
    %62 = vmatpush.msra.mxu0 %v55
    %63 = vmatpush.msra.mxu0 %v54
    %64 = vmatpush.msra.mxu0 %v53
    %65 = vmatpush.msra.mxu0 %v52
    %66 = vmatpush.msra.mxu0 %v51
    %67 = vmatpush.msra.mxu0 %v50
    %68 = vmatpush.msra.mxu0 %v49
    %69 = vmatpush.msra.mxu0 %v48
    %70 = vmatpush.msra.mxu0 %v47
    %71 = vmatpush.msra.mxu0 %v46
    %72 = vmatpush.msra.mxu0 %v45
    %73 = vmatpush.msra.mxu0 %v44
    %74 = vmatpush.msra.mxu0 %v43
    %75 = vmatmul.f32.gmra.mxu0 %v42
    %v76 = vpop.f32.mrf.mxu0
    %v77 = vadd.f32 0.0, %v76
    %78 = vdwg.mxu0
    %79 = vst [vmem:[#allocation7] sm:$0xff] %v77
    // Predicated region
    $region18: #{w_contrastive_forward.1} parent=1 // pred_check
      _
    $region19: #{w_contrastive_forward.1} parent=1 // pred_check_branch
      %81 = sbr.rel (0) target = $region21
    $region20: #{w_contrastive_forward.1} parent=1 // pred_region
      %83 = vsyncadd [#allocation4], 0
      %s85 = sshll.u32 [#allocation7], 4
      %s86 = int_to_ptr.vmem [resolvable:$true] %s85
      %s87 = sshll.u32 %s2, 4
      %s88 = int_to_ptr.hbm [resolvable:$true] %s87
      %90 = dma.vmem_to_hbm [thread:$0]  %s86, 128, %s88, [#allocation4]
    $region21: #{w_contrastive_forward.1} parent=1 // pred_fallthru
      _
    // Predicated region
    $region22: #{w_contrastive_forward.1} parent=1 // pred_check
      _
    $region23: #{w_contrastive_forward.1} parent=1 // pred_check_branch
      %92 = sbr.rel (0) target = $region25
    $region24: #{w_contrastive_forward.1} parent=1 // pred_region
      %94 = dma.done [#allocation4], 128
    $region25: #{w_contrastive_forward.1} parent=1 // pred_fallthru
      _
    %95 = vsyncpa [#allocation3], 1
    %96 = vsyncpa [#allocation6], 1
    %97 = vsyncpa [#allocation4], 1

</llo_original>
